<compile_context>
chip_gen: v7x
topology: tpu7x:2x2x1
jax: 0.10.0
libtpu: 0.0.40
codegen_flags: <defaults>
</compile_context>

<pallas_src>
import functools

import jax
import jax.numpy as jnp
from jax.experimental import pallas as pl
from jax.experimental.pallas import tpu as pltpu

# Sobel kernels (separable: sobel_x = [1,2,1]^T (x) [-1,0,1],
#                            sobel_y = [-1,0,1]^T (x) [1,2,1]).
SOBEL_X = ((-1.0, 0.0, 1.0), (-2.0, 0.0, 2.0), (-1.0, 0.0, 1.0))
SOBEL_Y = ((-1.0, -2.0, -1.0), (0.0, 0.0, 0.0), (1.0, 2.0, 1.0))
EPS = 1e-6


def _edge_loss_kernel(out_ref, tgt_ref, sum_ref, *, H, W, P, use_roll):
    """out_ref / tgt_ref: (P, H, W) VMEM blocks (one channel of P images).

    sum_ref: (1, 1) partial-sum output block owned by this grid step.
    """
    f32 = jnp.float32

    if use_roll:
        # Fully (8,128)-tile-aligned plane: neighbour shifts are cheap XLU
        # rolls; only the wrapped-in border row/column is zeroed (zero halo).
        row = jax.lax.broadcasted_iota(jnp.int32, (H, W), 0)
        col = jax.lax.broadcasted_iota(jnp.int32, (H, W), 1)
        zero = jnp.zeros((H, W), f32)
        first_row, last_row = row == 0, row == H - 1
        first_col, last_col = col == 0, col == W - 1

        def nbr_up(x):      # x[i-1, j], zero halo at i == 0
            return jnp.where(first_row, zero, pltpu.roll(x, 1, axis=0))

        def nbr_down(x):    # x[i+1, j], zero halo at i == H-1
            return jnp.where(last_row, zero, pltpu.roll(x, H - 1, axis=0))

        def nbr_left(x):    # x[i, j-1], zero halo at j == 0
            return jnp.where(first_col, zero, pltpu.roll(x, 1, axis=1))

        def nbr_right(x):   # x[i, j+1], zero halo at j == W-1
            return jnp.where(last_col, zero, pltpu.roll(x, W - 1, axis=1))
    else:
        # Unaligned plane (e.g. W % 128 != 0): rolling could drag layout
        # padding into valid lanes, so build zero-fill shifts from one
        # concatenate each instead.
        zrow = jnp.zeros((1, W), f32)
        zcol = jnp.zeros((H, 1), f32)

        def nbr_up(x):
            return jnp.concatenate([zrow, x[:H - 1, :]], axis=0)

        def nbr_down(x):
            return jnp.concatenate([x[1:, :], zrow], axis=0)

        def nbr_left(x):
            return jnp.concatenate([zcol, x[:, :W - 1]], axis=1)

        def nbr_right(x):
            return jnp.concatenate([x[:, 1:], zcol], axis=1)

    def edge_mag(x):
        # Separable zero-padded Sobel (~7 multiply-adds per pixel).
        up, dn = nbr_up(x), nbr_down(x)
        sv = up + 2.0 * x + dn                            # vertical [1,2,1]
        dv = dn - up                                      # vertical [-1,0,1]
        gx = nbr_right(sv) - nbr_left(sv)                 # Sobel-x response
        gy = nbr_left(dv) + 2.0 * dv + nbr_right(dv)      # Sobel-y response
        return jnp.sqrt(gx * gx + gy * gy + EPS)

    def body(p, acc):
        # One plane at a time keeps the live f32 temporaries bounded.
        mag_o = edge_mag(out_ref[p].astype(f32))
        mag_t = edge_mag(tgt_ref[p].astype(f32))
        return acc + jnp.sum(jnp.abs(mag_o - mag_t), axis=(0, 1), keepdims=True)

    sum_ref[...] = jax.lax.fori_loop(0, P, body, jnp.zeros((1, 1), f32))


def edge_loss(output, target, *, block_budget_bytes=2 * 1024 * 1024):
    """Matches EdgeLoss.forward: per-channel mean over first 3 channels, /3."""
    N, C, H, W = output.shape
    assert target.shape == output.shape
    assert C >= 3, "EdgeLoss uses the first 3 channels"

    itemsize = output.dtype.itemsize
    plane_in_bytes = H * W * itemsize

    # Batch P images per grid step (largest divisor of N under the budget).
    # The channel grid axis already guarantees >= 3 steps for 2-TC sharding.
    p_max = max(1, block_budget_bytes // plane_in_bytes)
    P = max(d for d in range(1, N + 1) if N % d == 0 and d <= p_max)
    G = N // P

    # Rolls only when the plane is fully (8, 128) tile-aligned (see kernel).
    use_roll = (H % 8 == 0) and (W % 128 == 0)

    # VMEM: 2 inputs x 2 pipeline buffers x block + ~8 live f32 planes of temps.
    vmem_need = 4 * P * plane_in_bytes + 8 * H * W * 4 + (1 << 20)
    vmem_limit = int(min(max(vmem_need, 32 << 20), 48 << 20))
    # TODO(synk): row-strip tiling (2-row halo) once a single (H, W) plane no
    # longer fits this budget (very large images), and lane-packing for W < 128.

    kernel = functools.partial(_edge_loss_kernel, H=H, W=W, P=P,
                               use_roll=use_roll)
    n_px = N * 3 * H * W
    cost = pl.CostEstimate(
        flops=30 * n_px,
        transcendentals=2 * n_px,
        bytes_accessed=2 * n_px * itemsize + G * 3 * 4,
    )

    partials = pl.pallas_call(
        kernel,
        out_shape=jax.ShapeDtypeStruct((G, 3, 1, 1), jnp.float32),
        grid=(G, 3),
        in_specs=[
            pl.BlockSpec((P, None, H, W), lambda g, c: (g, c, 0, 0)),
            pl.BlockSpec((P, None, H, W), lambda g, c: (g, c, 0, 0)),
        ],
        out_specs=pl.BlockSpec((None, None, 1, 1), lambda g, c: (g, c, 0, 0)),
        compiler_params=pltpu.CompilerParams(
            dimension_semantics=("parallel", "parallel"),
            vmem_limit_bytes=vmem_limit),
        cost_estimate=cost,
    )(output, target)

    total = jnp.sum(partials)
    # sum_c mean_c = total / (N*H*W); the module then divides by 3.
    return total / jnp.float32(3.0 * N * H * W)


def _edge_loss_reference(output, target):
    """Pure-JAX reference (same math as the PyTorch module)."""
    N, C, H, W = output.shape
    sx = jnp.array(SOBEL_X, jnp.float32)
    sy = jnp.array(SOBEL_Y, jnp.float32)

    def mag(xp):  # xp: (N, 1, H+2, W+2) zero-padded
        gx = jnp.zeros((N, 1, H, W), jnp.float32)
        gy = jnp.zeros((N, 1, H, W), jnp.float32)
        for di in range(3):
            for dj in range(3):
                win = xp[:, :, di:di + H, dj:dj + W]
                gx = gx + sx[di, dj] * win
                gy = gy + sy[di, dj] * win
        return jnp.sqrt(gx * gx + gy * gy + EPS)

    loss = 0.0
    for c in range(3):
        op = jnp.pad(output[:, c:c + 1].astype(jnp.float32),
                     ((0, 0), (0, 0), (1, 1), (1, 1)))
        tp = jnp.pad(target[:, c:c + 1].astype(jnp.float32),
                     ((0, 0), (0, 0), (1, 1), (1, 1)))
        loss = loss + jnp.mean(jnp.abs(mag(op) - mag(tp)))
    return loss / 3.0


if __name__ == "__main__":
    key = jax.random.PRNGKey(0)
    k1, k2 = jax.random.split(key)
    N, C, H, W = 2, 4, 16, 16   # C > 3: only the first 3 channels are read
    output = jax.random.normal(k1, (N, C, H, W), dtype=jnp.float32)
    target = jax.random.normal(k2, (N, C, H, W), dtype=jnp.float32)

    loss_fn = jax.jit(edge_loss)
    loss = jax.block_until_ready(loss_fn(output, target))

    ref = jax.block_until_ready(_edge_loss_reference(output, target))
    assert jnp.allclose(loss, ref, rtol=1e-5, atol=1e-5), (loss, ref)
    print("KERNEL_OK")
</pallas_src>

<mosaic_0001>
module attributes {stable_mosaic.version = 11 : i64} {
  func.func @_edge_loss_kernel(%arg0: i32, %arg1: i32, %arg2: memref<2x1x16x16xf32, #tpu.memory_space<vmem>>, %arg3: memref<2x1x16x16xf32, #tpu.memory_space<vmem>>, %arg4: memref<1x1x1x1xf32, #tpu.memory_space<vmem>>) attributes {dimension_semantics = [#tpu.dimension_semantics<parallel>, #tpu.dimension_semantics<parallel>], iteration_bounds = array<i64: 1, 3>, scalar_prefetch = 0 : i64, scratch_operands = 0 : i64, tpu.core_type = #tpu.core_type<tc>, window_params = [{transform_indices = @transform_0, window_bounds = array<i64: 2, 1, 16, 16>}, {transform_indices = @transform_1, window_bounds = array<i64: 2, 1, 16, 16>}, {transform_indices = @transform_2, window_bounds = array<i64: 1, 1, 1, 1>}]} {
    %cst = arith.constant 0.000000e+00 : f32
    %0 = vector.broadcast %cst : f32 to vector<1x16xf32>
    %cst_0 = arith.constant 0.000000e+00 : f32
    %1 = vector.broadcast %cst_0 : f32 to vector<16x1xf32>
    %cst_1 = arith.constant 0.000000e+00 : f32
    %2 = vector.broadcast %cst_1 : f32 to vector<1x1xf32>
    %c0_i32 = arith.constant 0 : i32
    %c2_i32 = arith.constant 2 : i32
    %3 = arith.addi %c0_i32, %c2_i32 : i32
    %c1_i32 = arith.constant 1 : i32
    %4 = scf.for %arg5 = %c0_i32 to %3 step %c1_i32 iter_args(%arg6 = %2) -> (vector<1x1xf32>)  : i32 {
      %8 = arith.index_cast %arg5 : i32 to index
      %c0_6 = arith.constant 0 : index
      %c0_7 = arith.constant 0 : index
      %c0_8 = arith.constant 0 : index
      %9 = vector.load %arg2[%8, %c0_6, %c0_7, %c0_8] : memref<2x1x16x16xf32, #tpu.memory_space<vmem>>, vector<1x1x16x16xf32>
      %10 = vector.shape_cast %9 : vector<1x1x16x16xf32> to vector<16x16xf32>
      %11 = vector.extract_strided_slice %10 {offsets = [0, 0], sizes = [15, 16], strides = [1, 1]} : vector<16x16xf32> to vector<15x16xf32>
      %12 = tpu.concatenate %0, %11 in 0 : vector<1x16xf32>, vector<15x16xf32> -> vector<16x16xf32>
      %13 = vector.extract_strided_slice %10 {offsets = [1, 0], sizes = [15, 16], strides = [1, 1]} : vector<16x16xf32> to vector<15x16xf32>
      %14 = tpu.concatenate %13, %0 in 0 : vector<15x16xf32>, vector<1x16xf32> -> vector<16x16xf32>
      %cst_9 = arith.constant 2.000000e+00 : f32
      %15 = vector.broadcast %cst_9 : f32 to vector<16x16xf32>
      %16 = arith.mulf %15, %10 : vector<16x16xf32>
      %17 = arith.addf %12, %16 : vector<16x16xf32>
      %18 = arith.addf %17, %14 : vector<16x16xf32>
      %19 = arith.subf %14, %12 : vector<16x16xf32>
      %20 = vector.extract_strided_slice %18 {offsets = [0, 1], sizes = [16, 15], strides = [1, 1]} : vector<16x16xf32> to vector<16x15xf32>
      %21 = tpu.concatenate %20, %1 in 1 : vector<16x15xf32>, vector<16x1xf32> -> vector<16x16xf32>
      %22 = vector.extract_strided_slice %18 {offsets = [0, 0], sizes = [16, 15], strides = [1, 1]} : vector<16x16xf32> to vector<16x15xf32>
      %23 = tpu.concatenate %1, %22 in 1 : vector<16x1xf32>, vector<16x15xf32> -> vector<16x16xf32>
      %24 = arith.subf %21, %23 : vector<16x16xf32>
      %25 = vector.extract_strided_slice %19 {offsets = [0, 0], sizes = [16, 15], strides = [1, 1]} : vector<16x16xf32> to vector<16x15xf32>
      %26 = tpu.concatenate %1, %25 in 1 : vector<16x1xf32>, vector<16x15xf32> -> vector<16x16xf32>
      %cst_10 = arith.constant 2.000000e+00 : f32
      %27 = vector.broadcast %cst_10 : f32 to vector<16x16xf32>
      %28 = arith.mulf %27, %19 : vector<16x16xf32>
      %29 = arith.addf %26, %28 : vector<16x16xf32>
      %30 = vector.extract_strided_slice %19 {offsets = [0, 1], sizes = [16, 15], strides = [1, 1]} : vector<16x16xf32> to vector<16x15xf32>
      %31 = tpu.concatenate %30, %1 in 1 : vector<16x15xf32>, vector<16x1xf32> -> vector<16x16xf32>
      %32 = arith.addf %29, %31 : vector<16x16xf32>
      %33 = arith.mulf %24, %24 : vector<16x16xf32>
      %34 = arith.mulf %32, %32 : vector<16x16xf32>
      %35 = arith.addf %33, %34 : vector<16x16xf32>
      %cst_11 = arith.constant 9.99999997E-7 : f32
      %36 = vector.broadcast %cst_11 : f32 to vector<16x16xf32>
      %37 = arith.addf %35, %36 : vector<16x16xf32>
      %38 = math.sqrt %37 : vector<16x16xf32>
      %39 = arith.index_cast %arg5 : i32 to index
      %c0_12 = arith.constant 0 : index
      %c0_13 = arith.constant 0 : index
      %c0_14 = arith.constant 0 : index
      %40 = vector.load %arg3[%39, %c0_12, %c0_13, %c0_14] : memref<2x1x16x16xf32, #tpu.memory_space<vmem>>, vector<1x1x16x16xf32>
      %41 = vector.shape_cast %40 : vector<1x1x16x16xf32> to vector<16x16xf32>
      %42 = vector.extract_strided_slice %41 {offsets = [0, 0], sizes = [15, 16], strides = [1, 1]} : vector<16x16xf32> to vector<15x16xf32>
      %43 = tpu.concatenate %0, %42 in 0 : vector<1x16xf32>, vector<15x16xf32> -> vector<16x16xf32>
      %44 = vector.extract_strided_slice %41 {offsets = [1, 0], sizes = [15, 16], strides = [1, 1]} : vector<16x16xf32> to vector<15x16xf32>
      %45 = tpu.concatenate %44, %0 in 0 : vector<15x16xf32>, vector<1x16xf32> -> vector<16x16xf32>
      %cst_15 = arith.constant 2.000000e+00 : f32
      %46 = vector.broadcast %cst_15 : f32 to vector<16x16xf32>
      %47 = arith.mulf %46, %41 : vector<16x16xf32>
      %48 = arith.addf %43, %47 : vector<16x16xf32>
      %49 = arith.addf %48, %45 : vector<16x16xf32>
      %50 = arith.subf %45, %43 : vector<16x16xf32>
      %51 = vector.extract_strided_slice %49 {offsets = [0, 1], sizes = [16, 15], strides = [1, 1]} : vector<16x16xf32> to vector<16x15xf32>
      %52 = tpu.concatenate %51, %1 in 1 : vector<16x15xf32>, vector<16x1xf32> -> vector<16x16xf32>
      %53 = vector.extract_strided_slice %49 {offsets = [0, 0], sizes = [16, 15], strides = [1, 1]} : vector<16x16xf32> to vector<16x15xf32>
      %54 = tpu.concatenate %1, %53 in 1 : vector<16x1xf32>, vector<16x15xf32> -> vector<16x16xf32>
      %55 = arith.subf %52, %54 : vector<16x16xf32>
      %56 = vector.extract_strided_slice %50 {offsets = [0, 0], sizes = [16, 15], strides = [1, 1]} : vector<16x16xf32> to vector<16x15xf32>
      %57 = tpu.concatenate %1, %56 in 1 : vector<16x1xf32>, vector<16x15xf32> -> vector<16x16xf32>
      %cst_16 = arith.constant 2.000000e+00 : f32
      %58 = vector.broadcast %cst_16 : f32 to vector<16x16xf32>
      %59 = arith.mulf %58, %50 : vector<16x16xf32>
      %60 = arith.addf %57, %59 : vector<16x16xf32>
      %61 = vector.extract_strided_slice %50 {offsets = [0, 1], sizes = [16, 15], strides = [1, 1]} : vector<16x16xf32> to vector<16x15xf32>
      %62 = tpu.concatenate %61, %1 in 1 : vector<16x15xf32>, vector<16x1xf32> -> vector<16x16xf32>
      %63 = arith.addf %60, %62 : vector<16x16xf32>
      %64 = arith.mulf %55, %55 : vector<16x16xf32>
      %65 = arith.mulf %63, %63 : vector<16x16xf32>
      %66 = arith.addf %64, %65 : vector<16x16xf32>
      %cst_17 = arith.constant 9.99999997E-7 : f32
      %67 = vector.broadcast %cst_17 : f32 to vector<16x16xf32>
      %68 = arith.addf %66, %67 : vector<16x16xf32>
      %69 = math.sqrt %68 : vector<16x16xf32>
      %70 = arith.subf %38, %69 : vector<16x16xf32>
      %71 = math.absf %70 : vector<16x16xf32>
      %72 = vector.shape_cast %71 : vector<16x16xf32> to vector<1x16x16xf32>
      %cst_18 = arith.constant dense<0.000000e+00> : vector<1xf32>
      %73 = vector.multi_reduction <add>, %72, %cst_18 [1, 2] : vector<1x16x16xf32> to vector<1xf32>
      %74 = vector.shape_cast %73 : vector<1xf32> to vector<1x1x1xf32>
      %75 = vector.extract %74[0, 0, 0] : f32 from vector<1x1x1xf32>
      %76 = vector.broadcast %75 : f32 to vector<1x1xf32>
      %77 = arith.addf %arg6, %76 : vector<1x1xf32>
      scf.yield %77 : vector<1x1xf32>
    }
    %c2_i32_2 = arith.constant 2 : i32
    %c0 = arith.constant 0 : index
    %c0_3 = arith.constant 0 : index
    %c0_4 = arith.constant 0 : index
    %c0_5 = arith.constant 0 : index
    %5 = vector.load %arg4[%c0, %c0_3, %c0_4, %c0_5] : memref<1x1x1x1xf32, #tpu.memory_space<vmem>>, vector<1x1x1x1xf32>
    %6 = vector.shape_cast %5 : vector<1x1x1x1xf32> to vector<1x1xf32>
    %7 = vector.shape_cast %4 : vector<1x1xf32> to vector<1x1x1x1xf32>
    tpu.vector_store %arg4[%c0, %c0_3, %c0_4, %c0_5], %7 {strides = array<i32>} : memref<1x1x1x1xf32, #tpu.memory_space<vmem>>, vector<1x1x1x1xf32>,
    return
  }
  func.func @transform_0(%arg0: i32, %arg1: i32) -> (i32, i32, i32, i32) {
    %c0_i32 = arith.constant 0 : i32
    %c0_i32_0 = arith.constant 0 : i32
    %c0_i32_1 = arith.constant 0 : i32
    return %arg0, %arg1, %c0_i32, %c0_i32_0 : i32, i32, i32, i32
  }
  func.func @transform_1(%arg0: i32, %arg1: i32) -> (i32, i32, i32, i32) {
    %c0_i32 = arith.constant 0 : i32
    %c0_i32_0 = arith.constant 0 : i32
    %c0_i32_1 = arith.constant 0 : i32
    return %arg0, %arg1, %c0_i32, %c0_i32_0 : i32, i32, i32, i32
  }
  func.func @transform_2(%arg0: i32, %arg1: i32) -> (i32, i32, i32, i32) {
    %c0_i32 = arith.constant 0 : i32
    %c0_i32_0 = arith.constant 0 : i32
    %c0_i32_1 = arith.constant 0 : i32
    return %arg0, %arg1, %c0_i32, %c0_i32_0 : i32, i32, i32, i32
  }
}

</mosaic_0001>

<llo_original>
// kernel: edge_loss.1
$region0: #{edge_loss.1}
  #allocation0 [shape = 'u32[]', space=smem, size = 0x4, offset = 0x4, fixed_abs, tag = 'smem constant byte address 0x4 - core index']
  #allocation1 [shape = 'u32[144,128]{1,0:T(1,128)}', space=vmem, size = 0x12000, scoped, tag = 'internal scratch']
  #allocation6 [shape = 's32[]', space=sflag, size = 0x4, offset = 0, fixed_abs, tag = 'sflag constant byte address 0x0 - dummy sync flag']
  #allocation8 [shape = 's32[]', space=sflag, size = 0x4, offset = 0, fixed_abs, tag = 'sflag constant byte address 0x0 - dummy sync flag']
  %s0 = inlined_call_operand.hbm [shape: f32[2,4,16,16], index: 0, kind: input, shape index: {}]
  %s1 = inlined_call_operand.hbm [shape: f32[2,4,16,16], index: 1, kind: input, shape index: {}]
  %s2 = inlined_call_operand.vmem [shape: f32[1,3,1,1], index: 2, kind: output, shape index: {}]
  %s3 = sld [smem:[#allocation0]]
  $region56: #{edge_loss.1} parent=0
    _
  %s5 = ssub.s32 1, %s3
  %s6 = scalar_select 0, %s5, %s3
  $region1: #{edge_loss.1} parent=0
    #allocation2 [shape = 'u8[32768]{0}', space=vmem, size = 0x8000, scoped, tag = 'input window, operand 0']
    #allocation3 [shape = 's32[2]{0}', space=sflag, size = 0x8, scoped, tag = 'scoped memory for edge_loss.1']
    #allocation4 [shape = 'u8[32768]{0}', space=vmem, size = 0x8000, scoped, tag = 'input window, operand 1']
    #allocation5 [shape = 's32[2]{0}', space=sflag, size = 0x8, scoped, tag = 'scoped memory for edge_loss.1']
    %7 = vsyncpa [#allocation3], 0
    %s8 = scalar_lea.sflag [#allocation3], 1
    %9 = vsyncpa %s8, 0
    %10 = vsyncpa [#allocation5], 0
    %s11 = scalar_lea.sflag [#allocation5], 1
    %12 = vsyncpa %s11, 0
    loop: start=0, step=1, limit=5
    $region2: #{edge_loss.1} parent=1 // loop_pre_header
      _
    $region3: #{edge_loss.1} parent=1 // loop_header
      %s14 = sphi 0, %s18
      %p15 = scmp.ge.s32.totalorder %s14, 5
      %s21 = sphi 0, %s33
      %s22 = sphi 0, %s29
      %s23 = sphi 0, %s21
      %s24 = sphi 0, %s22
      %s25 = sphi 0, %s23
      %s26 = sphi 0, %s24
      %s38 = sphi 0, %s40
      %s41 = sphi 0, %s38
      %s42 = sphi 0, %s41
      %s58 = sphi 0, %s42
      %s66 = sphi 0, %s68
      %s69 = sphi 0, %s66
      %s70 = sphi 0, %s69
      %s86 = sphi 0, %s70
      %s94 = sphi 0, %s96
      %s97 = sphi 0, %s94
      %s98 = sphi 0, %s97
      %s114 = sphi 0, %s98
    $region4: #{edge_loss.1} parent=1 // loop_header_branch
      %17 = sbr.rel (%p15) target = $region8
    $region5: #{edge_loss.1} parent=1 // loop_body
      %s19 = ssub.s32 %s14, 1
      %s20 = ssub.s32 %s14, 2
      %s27 = sadd.s32 1, %s22
      %p28 = scmp.ge.s32.totalorder %s27, 3
      %s29 = scalar_select %p28, 0, %s27
      %s30 = sadd.s32 1, %s21
      %s31 = scalar_select %p28, %s30, %s21
      %p32 = scmp.ge.s32.totalorder %s31, 1
      %s33 = scalar_select %p32, 0, %s31
      %s34 = ssub.s32 %s21, %s33
      %s35 = ssub.s32 %s22, %s29
      %s36 = sor.u32 %s34, %s35
      %p37 = scmp.eq.s32.totalorder %s36, 0
      %s39 = sadd.s32 %s38, 1
      %s40 = scalar_select %p37, %s38, %s39
      %p43 = pneg %p37
      %p44 = scmp.eq.s32.totalorder %s14, 2
      %p45 = por %p43, %p44
      %p46 = scmp.ne.s32.totalorder %s38, %s41
      %p47 = scmp.eq.s32.totalorder %s14, 0
      %p48 = por %p46, %p47
      %p49 = scmp.ne.s32.totalorder %s38, %s41
      %p50 = scmp.eq.s32.totalorder %s19, 2
      %p51 = por %p49, %p50
      %p52 = scmp.ne.s32.totalorder %s41, %s42
      %p53 = scmp.eq.s32.totalorder %s19, 0
      %p54 = por %p52, %p53
      %p55 = scmp.ne.s32.totalorder %s41, %s42
      %p56 = scmp.eq.s32.totalorder %s20, 2
      %p57 = por %p55, %p56
      %p59 = scmp.ne.s32.totalorder %s42, %s58
      %p60 = scmp.eq.s32.totalorder %s20, 0
      %p61 = por %p59, %p60
      %s62 = ssub.s32 %s21, %s33
      %s63 = ssub.s32 %s22, %s29
      %s64 = sor.u32 %s62, %s63
      %p65 = scmp.eq.s32.totalorder %s64, 0
      %s67 = sadd.s32 %s66, 1
      %s68 = scalar_select %p65, %s66, %s67
      %p71 = pneg %p65
      %p72 = scmp.eq.s32.totalorder %s14, 2
      %p73 = por %p71, %p72
      %p74 = scmp.ne.s32.totalorder %s66, %s69
      %p75 = scmp.eq.s32.totalorder %s14, 0
      %p76 = por %p74, %p75
      %p77 = scmp.ne.s32.totalorder %s66, %s69
      %p78 = scmp.eq.s32.totalorder %s19, 2
      %p79 = por %p77, %p78
      %p80 = scmp.ne.s32.totalorder %s69, %s70
      %p81 = scmp.eq.s32.totalorder %s19, 0
      %p82 = por %p80, %p81
      %p83 = scmp.ne.s32.totalorder %s69, %s70
      %p84 = scmp.eq.s32.totalorder %s20, 2
      %p85 = por %p83, %p84
      %p87 = scmp.ne.s32.totalorder %s70, %s86
      %p88 = scmp.eq.s32.totalorder %s20, 0
      %p89 = por %p87, %p88
      %s90 = ssub.s32 %s21, %s33
      %s91 = ssub.s32 %s22, %s29
      %s92 = sor.u32 %s90, %s91
      %p93 = scmp.eq.s32.totalorder %s92, 0
      %s95 = sadd.s32 %s94, 1
      %s96 = scalar_select %p93, %s94, %s95
      %p99 = pneg %p93
      %p100 = scmp.eq.s32.totalorder %s14, 2
      %p101 = por %p99, %p100
      %p102 = scmp.ne.s32.totalorder %s94, %s97
      %p103 = scmp.eq.s32.totalorder %s14, 0
      %p104 = por %p102, %p103
      %p105 = scmp.ne.s32.totalorder %s94, %s97
      %p106 = scmp.eq.s32.totalorder %s19, 2
      %p107 = por %p105, %p106
      %p108 = scmp.ne.s32.totalorder %s97, %s98
      %p109 = scmp.eq.s32.totalorder %s19, 0
      %p110 = por %p108, %p109
      %p111 = scmp.ne.s32.totalorder %s97, %s98
      %p112 = scmp.eq.s32.totalorder %s20, 2
      %p113 = por %p111, %p112
      %p115 = scmp.ne.s32.totalorder %s98, %s114
      %p116 = scmp.eq.s32.totalorder %s20, 0
      %p117 = por %p115, %p116
      %p118 = scmp.le.s32.totalorder 1, %s14
      %p119 = scmp.lt.s32.totalorder %s14, 4
      %p120 = pnand %p118, %p119
      %p121 = pneg %p120
      // Predicated region
      $region9: #{edge_loss.1} parent=5 // pred_check
        _
      $region10: #{edge_loss.1} parent=5 // pred_check_branch
        %123 = sbr.rel (%p120) target = $region12
      $region11: #{edge_loss.1} parent=5 // pred_region
        %s124 = ssub.s32 %s14, 1
      $region12: #{edge_loss.1} parent=5 // pred_fallthru
        _
      %p125 = scmp.lt.s32.totalorder %s14, 3
      // Predicated region
      $region13: #{edge_loss.1} parent=5 // pred_check
        %p126 = pneg %p125
      $region14: #{edge_loss.1} parent=5 // pred_check_branch
        %128 = sbr.rel (%p126) target = $region16
      $region15: #{edge_loss.1} parent=5 // pred_region
        // Predicated region
        $region17: #{edge_loss.1} parent=15 // pred_check
          %p129 = pneg %p48
        $region18: #{edge_loss.1} parent=15 // pred_check_branch
          %131 = sbr.rel (%p129) target = $region20
        $region19: #{edge_loss.1} parent=15 // pred_region
          #allocation7 [shape = 'u32[6]{0}', space=smem, size = 0x18, scoped, tag = 'DMA stride descriptor']
          %s132 = sand.u32 %s38, 1
          %s133 = scalar_lea.sflag [#allocation3], %s132
          %s134 = sand.u32 %s38, 1
          %s135 = smul.addr %s134, 32
          %s136 = scalar_lea.vmem [#allocation2], %s135
          %s137 = smul.u32 2, %s21
          %s139 = ssub.s32 512, 512
          %140 = vsyncadd %s133, %s139
          %s141 = smul.addr %s22, 2
          %s142 = smul.addr %s137, 8
          %s143 = sadd.s32 %s141, %s142
          %s144 = smul.addr %s143, 128
          %s145 = scalar_lea.hbm %s0, %s144
          %s147 = sshll.u32 1, 14
          %s148 = sxor.u32 4294967295, %s147
          %s150 = sld [smem:[#allocation0]]
          %s151 = sadd.s32 2, %s150
          %s153 = sshll.u32 7, 26
          %s154 = sxor.u32 4294967295, %s153
          %s155 = sand.u32 0, %s154
          %s156 = sshll.u32 %s151, 26
          %s157 = sor.u32 %s155, %s156
          %s158 = sshll.u32 %s136, 4
          %s159 = int_to_ptr.vmem [resolvable:$true] %s158
          %165 = sst [smem:[#allocation7]] 1024
          %s166 = scalar_lea.smem [#allocation7], 1
          %167 = sst [smem:[%s166]] 256
          %s168 = scalar_lea.smem [#allocation7], 2
          %169 = sst [smem:[%s168]] 2
          %s170 = scalar_lea.smem [#allocation7], 3
          %171 = sst [smem:[%s170]] 128
          %s172 = scalar_lea.smem [#allocation7], 4
          %173 = sst [smem:[%s172]] 128
          %s174 = scalar_lea.smem [#allocation7], 5
          %175 = sst [smem:[%s174]] 8
          %177 = dma.general %s145, 512, %s159, %s133, [#allocation6], [#allocation7], %s157, 0
        $region20: #{edge_loss.1} parent=15 // pred_fallthru
          _
        // Predicated region
        $region21: #{edge_loss.1} parent=15 // pred_check
          %p178 = pneg %p76
        $region22: #{edge_loss.1} parent=15 // pred_check_branch
          %180 = sbr.rel (%p178) target = $region24
        $region23: #{edge_loss.1} parent=15 // pred_region
          #allocation9 [shape = 'u32[6]{0}', space=smem, size = 0x18, scoped, tag = 'DMA stride descriptor']
          %s181 = sand.u32 %s66, 1
          %s182 = scalar_lea.sflag [#allocation5], %s181
          %s183 = sand.u32 %s66, 1
          %s184 = smul.addr %s183, 32
          %s185 = scalar_lea.vmem [#allocation4], %s184
          %s186 = smul.u32 2, %s21
          %s188 = ssub.s32 512, 512
          %189 = vsyncadd %s182, %s188
          %s190 = smul.addr %s22, 2
          %s191 = smul.addr %s186, 8
          %s192 = sadd.s32 %s190, %s191
          %s193 = smul.addr %s192, 128
          %s194 = scalar_lea.hbm %s1, %s193
          %s196 = sshll.u32 1, 14
          %s197 = sxor.u32 4294967295, %s196
          %s199 = sld [smem:[#allocation0]]
          %s200 = sadd.s32 2, %s199
          %s202 = sshll.u32 7, 26
          %s203 = sxor.u32 4294967295, %s202
          %s204 = sand.u32 0, %s203
          %s205 = sshll.u32 %s200, 26
          %s206 = sor.u32 %s204, %s205
          %s207 = sshll.u32 %s185, 4
          %s208 = int_to_ptr.vmem [resolvable:$true] %s207
          %214 = sst [smem:[#allocation9]] 1024
          %s215 = scalar_lea.smem [#allocation9], 1
          %216 = sst [smem:[%s215]] 256
          %s217 = scalar_lea.smem [#allocation9], 2
          %218 = sst [smem:[%s217]] 2
          %s219 = scalar_lea.smem [#allocation9], 3
          %220 = sst [smem:[%s219]] 128
          %s221 = scalar_lea.smem [#allocation9], 4
          %222 = sst [smem:[%s221]] 128
          %s223 = scalar_lea.smem [#allocation9], 5
          %224 = sst [smem:[%s223]] 8
          %226 = dma.general %s194, 512, %s208, %s182, [#allocation8], [#allocation9], %s206, 0
        $region24: #{edge_loss.1} parent=15 // pred_fallthru
          _
      $region16: #{edge_loss.1} parent=5 // pred_fallthru
        _
      %p227 = scmp.le.s32.totalorder 1, %s14
      %p228 = scmp.lt.s32.totalorder %s14, 4
      %p229 = pnand %p227, %p228
      %p230 = pneg %p229
      // Predicated region
      $region25: #{edge_loss.1} parent=5 // pred_check
        _
      $region26: #{edge_loss.1} parent=5 // pred_check_branch
        %232 = sbr.rel (%p229) target = $region28
      $region27: #{edge_loss.1} parent=5 // pred_region
        %s233 = ssub.s32 %s14, 1
        %s234 = sand.u32 %s41, 1
        %s235 = scalar_lea.sflag [#allocation3], %s234
        %s236 = sand.u32 %s41, 1
        %s237 = smul.addr %s236, 32
        %s238 = scalar_lea.vmem [#allocation2], %s237
        // Predicated region
        $region29: #{edge_loss.1} parent=27 // pred_check
          %p239 = pneg %p54
        $region30: #{edge_loss.1} parent=27 // pred_check_branch
          %241 = sbr.rel (%p239) target = $region32
        $region31: #{edge_loss.1} parent=27 // pred_region
          %242 = dma.done %s235, 512
        $region32: #{edge_loss.1} parent=27 // pred_fallthru
          _
        %s243 = sand.u32 %s69, 1
        %s244 = scalar_lea.sflag [#allocation5], %s243
        %s245 = sand.u32 %s69, 1
        %s246 = smul.addr %s245, 32
        %s247 = scalar_lea.vmem [#allocation4], %s246
        // Predicated region
        $region33: #{edge_loss.1} parent=27 // pred_check
          %p248 = pneg %p82
        $region34: #{edge_loss.1} parent=27 // pred_check_branch
          %250 = sbr.rel (%p248) target = $region36
        $region35: #{edge_loss.1} parent=27 // pred_region
          %251 = dma.done %s244, 512
        $region36: #{edge_loss.1} parent=27 // pred_fallthru
          _
        %s252 = sand.u32 %s41, 1
        %s253 = scalar_lea.sflag [#allocation3], %s252
        %s254 = sand.u32 %s41, 1
        %s255 = smul.addr %s254, 32
        %s256 = scalar_lea.vmem [#allocation2], %s255
        %p257 = pneg %p54
        %p258 = pneg %p51
        %s259 = sand.u32 %s69, 1
        %s260 = scalar_lea.sflag [#allocation5], %s259
        %s261 = sand.u32 %s69, 1
        %s262 = smul.addr %s261, 32
        %s263 = scalar_lea.vmem [#allocation4], %s262
        %p264 = pneg %p82
        %p265 = pneg %p79
        %p266 = pneg %p110
        %p267 = pneg %p107
        %p268 = scmp.lt.s32.totalorder %s23, 0
        %s269 = scalar_select %p268, %s23, 0
        %p270 = scmp.lt.s32.totalorder %s24, 2
        %s271 = scalar_select %p270, %s24, 2
        %s272 = smul.addr %s269, 3
        %s273 = sadd.s32 %s271, %s272
        %s274 = scalar_lea.vmem %s2, %s273
        %s275 = smul.u32 2, %s23
        %s276 = smul.u32 2, %s23
        %p277 = scmp.lt.s32.totalorder %s23, 0
        %s278 = scalar_select %p277, %s23, 0
        %p279 = scmp.lt.s32.totalorder %s24, 2
        %s280 = scalar_select %p279, %s24, 2
        %s281 = smul.addr %s278, 3
        %s282 = sadd.s32 %s280, %s281
        %s283 = scalar_lea.vmem %s2, %s282
        loop: start=0, step=1, limit=2
        $region37: #{edge_loss.1} parent=27 // loop_pre_header
          _
        $region38: #{edge_loss.1} parent=27 // loop_header
          %s285 = sphi 0, %s289
          %p286 = scmp.ge.s32.totalorder %s285, 2
          %v290 = vphi 0.0, %v496
        $region39: #{edge_loss.1} parent=27 // loop_header_branch
          %288 = sbr.rel (%p286) target = $region43
        $region40: #{edge_loss.1} parent=27 // loop_body
          %s291 = smul.u32 %s285, 16
          %s292 = scalar_lea.vmem %s238, %s291 [#allocation2]
          %v293 = vld [vmem:[%s292] sm:$0xff]
          %v294 = vld [vmem:[%s292 + $0x8] sm:$0xff]
          %vm297 = vcmask 1040384
          %v298 = vrot.slane %v293, 7
          %v299 = vrot.slane %v294, 7
          %v300 = vsel %vm297, %v298, %v299
          %v303 = vsel %vm297, 0.0, %v298
          %vm304 = vcmask 1046528
          %v305 = vrot.slane %v293, 1
          %v306 = vrot.slane %v294, 1
          %v307 = vsel %vm304, %v305, %v306
          %v310 = vsel %vm304, %v306, 0.0
          %v311 = vmul.f32 %v293, 2.0
          %v312 = vmul.f32 %v294, 2.0
          %v313 = vadd.f32 %v303, %v311
          %v314 = vadd.f32 %v300, %v312
          %v315 = vadd.f32 %v313, %v307
          %v316 = vadd.f32 %v314, %v310
          %v317 = vsub.f32 %v307, %v303
          %v318 = vsub.f32 %v310, %v300
          %321 = vrot.lane.b32.xlu0 %v315, 127
          %v322 = vpop.permute.xlu0 %321
          %323 = vrot.lane.b32.xlu0 %v316, 127
          %v324 = vpop.permute.xlu0 %323
          %vm327 = vcmask 121856
          %v328 = vsel %vm327, %v322, 0.0
          %v329 = vsel %vm327, %v324, 0.0
          %330 = vrot.lane.b32.xlu0 %v315, 1
          %v331 = vpop.permute.xlu0 %330
          %332 = vrot.lane.b32.xlu0 %v316, 1
          %v333 = vpop.permute.xlu0 %332
          %vm336 = vcmask 7168
          %v337 = vsel %vm336, 0.0, %v331
          %v338 = vsel %vm336, 0.0, %v333
          %v339 = vsub.f32 %v328, %v337
          %v340 = vsub.f32 %v329, %v338
          %343 = vrot.lane.b32.xlu0 %v317, 1
          %v344 = vpop.permute.xlu0 %343
          %345 = vrot.lane.b32.xlu0 %v318, 1
          %v346 = vpop.permute.xlu0 %345
          %v349 = vsel %vm336, 0.0, %v344
          %v350 = vsel %vm336, 0.0, %v346
          %v351 = vmul.f32 %v317, 2.0
          %v352 = vmul.f32 %v318, 2.0
          %v353 = vadd.f32 %v349, %v351
          %v354 = vadd.f32 %v350, %v352
          %355 = vrot.lane.b32.xlu0 %v317, 127
          %v356 = vpop.permute.xlu0 %355
          %357 = vrot.lane.b32.xlu0 %v318, 127
          %v358 = vpop.permute.xlu0 %357
          %v361 = vsel %vm327, %v356, 0.0
          %v362 = vsel %vm327, %v358, 0.0
          %v363 = vadd.f32 %v353, %v361
          %v364 = vadd.f32 %v354, %v362
          %v365 = vmul.f32 %v339, %v339
          %v366 = vmul.f32 %v340, %v340
          %v367 = vmul.f32 %v363, %v363
          %v368 = vmul.f32 %v364, %v364
          %v369 = vadd.f32 %v365, %v367
          %v370 = vadd.f32 %v366, %v368
          %v371 = vadd.f32 %v369, 1e-06
          %v372 = vadd.f32 %v370, 1e-06
          %v373 = vrsqrt.pop %v371
          %v374 = vmul.f32 %v371, %v373
          %vm375 = vcmp.eq.f32.partialorder %v371, inf
          %v376 = vsel %vm375, %v371, %v374
          %vm377 = vcmp.eq.f32.partialorder %v371, 0.0
          %v378 = vand.u32 %v371, 2147483648
          %v379 = vsel %vm377, %v378, %v376
          %v380 = vrsqrt.pop %v372
          %v381 = vmul.f32 %v372, %v380
          %vm382 = vcmp.eq.f32.partialorder %v372, inf
          %v383 = vsel %vm382, %v372, %v381
          %vm384 = vcmp.eq.f32.partialorder %v372, 0.0
          %v385 = vand.u32 %v372, 2147483648
          %v386 = vsel %vm384, %v385, %v383
          %s387 = scalar_lea.vmem %s247, %s291 [#allocation4]
          %v388 = vld [vmem:[%s387] sm:$0xff]
          %v389 = vld [vmem:[%s387 + $0x8] sm:$0xff]
          %v392 = vrot.slane %v388, 7
          %v393 = vrot.slane %v389, 7
          %v394 = vsel %vm297, %v392, %v393
          %v397 = vsel %vm297, 0.0, %v392
          %v398 = vrot.slane %v388, 1
          %v399 = vrot.slane %v389, 1
          %v400 = vsel %vm304, %v398, %v399
          %v403 = vsel %vm304, %v399, 0.0
          %v404 = vmul.f32 %v388, 2.0
          %v405 = vmul.f32 %v389, 2.0
          %v406 = vadd.f32 %v397, %v404
          %v407 = vadd.f32 %v394, %v405
          %v408 = vadd.f32 %v406, %v400
          %v409 = vadd.f32 %v407, %v403
          %v410 = vsub.f32 %v400, %v397
          %v411 = vsub.f32 %v403, %v394
          %414 = vrot.lane.b32.xlu0 %v408, 127
          %v415 = vpop.permute.xlu0 %414
          %416 = vrot.lane.b32.xlu0 %v409, 127
          %v417 = vpop.permute.xlu0 %416
          %v420 = vsel %vm327, %v415, 0.0
          %v421 = vsel %vm327, %v417, 0.0
          %422 = vrot.lane.b32.xlu0 %v408, 1
          %v423 = vpop.permute.xlu0 %422
          %424 = vrot.lane.b32.xlu0 %v409, 1
          %v425 = vpop.permute.xlu0 %424
          %v428 = vsel %vm336, 0.0, %v423
          %v429 = vsel %vm336, 0.0, %v425
          %v430 = vsub.f32 %v420, %v428
          %v431 = vsub.f32 %v421, %v429
          %434 = vrot.lane.b32.xlu0 %v410, 1
          %v435 = vpop.permute.xlu0 %434
          %436 = vrot.lane.b32.xlu0 %v411, 1
          %v437 = vpop.permute.xlu0 %436
          %v440 = vsel %vm336, 0.0, %v435
          %v441 = vsel %vm336, 0.0, %v437
          %v442 = vmul.f32 %v410, 2.0
          %v443 = vmul.f32 %v411, 2.0
          %v444 = vadd.f32 %v440, %v442
          %v445 = vadd.f32 %v441, %v443
          %446 = vrot.lane.b32.xlu0 %v410, 127
          %v447 = vpop.permute.xlu0 %446
          %448 = vrot.lane.b32.xlu0 %v411, 127
          %v449 = vpop.permute.xlu0 %448
          %v452 = vsel %vm327, %v447, 0.0
          %v453 = vsel %vm327, %v449, 0.0
          %v454 = vadd.f32 %v444, %v452
          %v455 = vadd.f32 %v445, %v453
          %v456 = vmul.f32 %v430, %v430
          %v457 = vmul.f32 %v431, %v431
          %v458 = vmul.f32 %v454, %v454
          %v459 = vmul.f32 %v455, %v455
          %v460 = vadd.f32 %v456, %v458
          %v461 = vadd.f32 %v457, %v459
          %v462 = vadd.f32 %v460, 1e-06
          %v463 = vadd.f32 %v461, 1e-06
          %v464 = vrsqrt.pop %v462
          %v465 = vmul.f32 %v462, %v464
          %vm466 = vcmp.eq.f32.partialorder %v462, inf
          %v467 = vsel %vm466, %v462, %v465
          %vm468 = vcmp.eq.f32.partialorder %v462, 0.0
          %v469 = vand.u32 %v462, 2147483648
          %v470 = vsel %vm468, %v469, %v467
          %v471 = vrsqrt.pop %v463
          %v472 = vmul.f32 %v463, %v471
          %vm473 = vcmp.eq.f32.partialorder %v463, inf
          %v474 = vsel %vm473, %v463, %v472
          %vm475 = vcmp.eq.f32.partialorder %v463, 0.0
          %v476 = vand.u32 %v463, 2147483648
          %v477 = vsel %vm475, %v476, %v474
          %v478 = vsub.f32 %v379, %v470
          %v479 = vsub.f32 %v386, %v477
          %v480 = vand.u32 2147483647, %v478
          %v481 = vand.u32 2147483647, %v479
          %vm482 = vcmask 130048
          %v483 = vsel %vm482, %v480, 0.0
          %v484 = vsel %vm482, %v481, 0.0
          %v485 = vadd.f32 %v483, %v484
          %486 = vadd.xlane.f32.xlu0 %v485
          %v487 = vpop.xlane.xlu0 %486
          %v488 = vrot.slane %v487, 4
          %v489 = vadd.f32 %v487, %v488
          %v490 = vrot.slane %v489, 2
          %v491 = vadd.f32 %v489, %v490
          %v492 = vrot.slane %v491, 1
          %v493 = vadd.f32 %v491, %v492
          %s494 = vtos %v493
          %v495 = vstv %s494
          %v496 = vadd.f32 %v290, %v495
        $region41: #{edge_loss.1} parent=27 // loop_footer
          %s289 = sadd.s32 1, %s285
        $region42: #{edge_loss.1} parent=27 // loop_footer_branch
          %284 = sbr.rel target = $region38
        $region43: #{edge_loss.1} parent=27 // loop_exit
          _
        %vm497 = vcmask 0
        %498 = vst.msk [vmem:[%s283] sm:$0x1] %vm497, %v290
        %p499 = scmp.lt.s32.totalorder %s23, 0
        %s500 = scalar_select %p499, %s23, 0
        %p501 = scmp.lt.s32.totalorder %s24, 2
        %s502 = scalar_select %p501, %s24, 2
        %s503 = smul.addr %s500, 3
        %s504 = sadd.s32 %s502, %s503
        %s505 = scalar_lea.vmem %s2, %s504
        // Predicated region
        $region44: #{edge_loss.1} parent=27 // pred_check
          %p506 = pneg %p107
        $region45: #{edge_loss.1} parent=27 // pred_check_branch
          %508 = sbr.rel (%p506) target = $region47
        $region46: #{edge_loss.1} parent=27 // pred_region
          _
        $region47: #{edge_loss.1} parent=27 // pred_fallthru
          _
      $region28: #{edge_loss.1} parent=5 // pred_fallthru
        _
      %p509 = scmp.le.s32.totalorder 2, %s14
      // Predicated region
      $region48: #{edge_loss.1} parent=5 // pred_check
        %p510 = pneg %p509
      $region49: #{edge_loss.1} parent=5 // pred_check_branch
        %512 = sbr.rel (%p510) target = $region51
      $region50: #{edge_loss.1} parent=5 // pred_region
        %s513 = ssub.s32 %s14, 2
        // Predicated region
        $region52: #{edge_loss.1} parent=50 // pred_check
          %p514 = pneg %p113
        $region53: #{edge_loss.1} parent=50 // pred_check_branch
          %516 = sbr.rel (%p514) target = $region55
        $region54: #{edge_loss.1} parent=50 // pred_region
          %p517 = scmp.lt.s32.totalorder %s25, 0
          %s518 = scalar_select %p517, %s25, 0
          %p519 = scmp.lt.s32.totalorder %s26, 2
          %s520 = scalar_select %p519, %s26, 2
          %s521 = smul.addr %s518, 3
          %s522 = sadd.s32 %s520, %s521
          %s523 = scalar_lea.vmem %s2, %s522
        $region55: #{edge_loss.1} parent=50 // pred_fallthru
          _
      $region51: #{edge_loss.1} parent=5 // pred_fallthru
        _
    $region6: #{edge_loss.1} parent=1 // loop_footer
      %s18 = sadd.s32 1, %s14
    $region7: #{edge_loss.1} parent=1 // loop_footer_branch
      %13 = sbr.rel target = $region3
    $region8: #{edge_loss.1} parent=1 // loop_exit
      _
    %524 = vsyncpa [#allocation3], 1
    %s525 = scalar_lea.sflag [#allocation3], 1
    %526 = vsyncpa %s525, 1
    %527 = vsyncpa [#allocation5], 1
    %s528 = scalar_lea.sflag [#allocation5], 1
    %529 = vsyncpa %s528, 1

</llo_original>
